<compile_context>
chip_gen: v7x
topology: tpu7x:2x2x1
jax: 0.10.0
libtpu: 0.0.40
codegen_flags: <defaults>
</compile_context>

<pallas_src>
import functools

import jax
import jax.numpy as jnp
from jax.experimental import pallas as pl
from jax.experimental.pallas import tpu as pltpu


def _round_up(x: int, m: int) -> int:
    return ((x + m - 1) // m) * m


def graph_reconstructor_kernel(pairs_ref, hs_ref, w1_ref, w2_ref, w3_ref,
                               b_ref, out_ref):
    # pairs_ref : (1, 2*TILE_P, 2) int32   rows [0,TILE_P)  = (h_start, h_end)
    #                                      rows [TILE_P,2P) = (t_start, t_end)
    # hs_ref    : (1, S, H)        f32/bf16
    # w{1,2,3}  : (H, R_pad)       f32/bf16 (blocks of W^T)
    # b_ref     : (1, R_pad)       f32
    # out_ref   : (1, TILE_P, R_pad) f32
    idx = pairs_ref[0]                      # (2*TILE_P, 2)
    hidden = hs_ref[0]                      # (S, H)
    two_p, _ = idx.shape
    tile_p = two_p // 2
    S = hidden.shape[0]
    mxu_dtype = w1_ref.dtype                # f32 or bf16 (matches hidden)

    # ---- fused gather + averaging: one (2P, S) @ (S, H) MXU pass ----------
    start_idx = idx[:, 0:1]                 # (2P, 1)
    end_idx = idx[:, 1:2]                   # (2P, 1)
    pos = jax.lax.broadcasted_iota(jnp.int32, (two_p, S), 1)
    # 0.5 folded into the matrix; start==end correctly yields weight 1.0.
    avg_mat = ((pos == start_idx).astype(jnp.float32)
               + (pos == end_idx).astype(jnp.float32)) * 0.5     # (2P, S) f32

    gathered = jnp.dot(avg_mat.astype(mxu_dtype), hidden,
                       preferred_element_type=jnp.float32)       # (2P, H) f32

    head = gathered[:tile_p]                # (TILE_P, H) f32  (sublane-aligned)
    tail = gathered[tile_p:]                # (TILE_P, H) f32
    prod = head * tail                      # f32 VPU

    # ---- projection without concat: three accumulated MXU passes ----------
    logits = jnp.dot(head.astype(mxu_dtype), w1_ref[...],
                     preferred_element_type=jnp.float32)
    logits = logits + jnp.dot(tail.astype(mxu_dtype), w2_ref[...],
                              preferred_element_type=jnp.float32)
    logits = logits + jnp.dot(prod.astype(mxu_dtype), w3_ref[...],
                              preferred_element_type=jnp.float32)
    logits = logits + b_ref[...]            # (TILE_P, R_pad) + (1, R_pad)

    out_ref[0] = logits.astype(out_ref.dtype)


@functools.partial(jax.jit, static_argnames=("use_bf16_mxu", "tile_p"))
def graph_reconstructor(pairs, hidden_states, weight, bias, *,
                        use_bf16_mxu: bool = False, tile_p: int = 256):
    """
    pairs         : [B, P, 2, 2] int     (head/tail, start/end token indices)
    hidden_states : [B, S, H]    float32
    weight        : [R, 3H]      float32 (nn.Linear weight, torch layout)
    bias          : [R]          float32
    returns logits: [B, P, R]    float32
    """
    B, P = pairs.shape[0], pairs.shape[1]
    S, H = hidden_states.shape[1], hidden_states.shape[2]
    R = weight.shape[0]

    # ---- layout prep (wrapper side) ---------------------------------------
    R_pad = _round_up(max(R, 1), 128)                 # lane-dense output store
    TILE_P = int(min(_round_up(P, 8), _round_up(tile_p, 8)))
    P_pad = _round_up(P, TILE_P)
    n_t = P_pad // TILE_P

    # Repack pairs per P-tile as [head rows ; tail rows], last dim = (start,end)
    p4 = pairs.astype(jnp.int32).reshape(B, P, 2, 2)
    if P_pad != P:
        p4 = jnp.pad(p4, ((0, 0), (0, P_pad - P), (0, 0), (0, 0)))
    idx_packed = (p4.reshape(B, n_t, TILE_P, 2, 2)
                  .transpose(0, 1, 3, 2, 4)           # [b, t, head/tail, p, s/e]
                  .reshape(B, n_t * 2 * TILE_P, 2))

    # Split W^T into the three H-blocks, pad R -> R_pad with zeros.
    w_t = weight.T.astype(jnp.float32)                # (3H, R)
    bias_f = bias.astype(jnp.float32)
    if R_pad != R:
        w_t = jnp.pad(w_t, ((0, 0), (0, R_pad - R)))
        bias_f = jnp.pad(bias_f, (0, R_pad - R))
    w1, w2, w3 = w_t[:H], w_t[H:2 * H], w_t[2 * H:]
    bias2d = bias_f.reshape(1, R_pad)

    hs = hidden_states.astype(jnp.float32)
    if use_bf16_mxu:                                  # v6e/v7x MXU operands
        hs = hs.astype(jnp.bfloat16)
        w1, w2, w3 = (w.astype(jnp.bfloat16) for w in (w1, w2, w3))
    op_bytes = 2 if use_bf16_mxu else 4

    # ---- VMEM budget (set an explicit limit only if the default is tight) --
    vmem_est = (2 * S * H * op_bytes                  # hidden (double-buffered)
                + 3 * H * R_pad * op_bytes            # resident weight blocks
                + 2 * TILE_P * R_pad * 4              # output tile (dbl-buf)
                + 2 * 2 * TILE_P * 128 * 4            # pairs tile (lane-padded)
                + 2 * TILE_P * S * 4                  # fused one-hot operand
                + 6 * TILE_P * H * 4                  # gathered/prod/logits tmp
                + (1 << 20))                          # headroom
    vmem_limit = None
    if vmem_est > 16 * 1024 * 1024:
        vmem_limit = int(min(vmem_est * 3 // 2, 60 * 1024 * 1024))

    out = pl.pallas_call(
        graph_reconstructor_kernel,
        out_shape=jax.ShapeDtypeStruct((B, P_pad, R_pad), jnp.float32),
        grid_spec=pltpu.PrefetchScalarGridSpec(
            num_scalar_prefetch=0,
            grid=(B, n_t),
            in_specs=[
                pl.BlockSpec((1, 2 * TILE_P, 2), lambda b, p: (b, p, 0)),
                pl.BlockSpec((1, S, H), lambda b, p: (b, 0, 0)),
                pl.BlockSpec((H, R_pad), lambda b, p: (0, 0)),
                pl.BlockSpec((H, R_pad), lambda b, p: (0, 0)),
                pl.BlockSpec((H, R_pad), lambda b, p: (0, 0)),
                pl.BlockSpec((1, R_pad), lambda b, p: (0, 0)),
            ],
            out_specs=pl.BlockSpec((1, TILE_P, R_pad), lambda b, p: (b, p, 0)),
        ),
        compiler_params=pltpu.CompilerParams(
            dimension_semantics=("parallel", "parallel"),
            vmem_limit_bytes=vmem_limit),
    )(idx_packed, hs, w1, w2, w3, bias2d)

    return out[:, :P, :R]


def reference(pairs, hidden_states, weight, bias):
    B, P = pairs.shape[0], pairs.shape[1]
    idx = pairs.reshape(B, P, 4).astype(jnp.int32)
    take = lambda c: jnp.take_along_axis(
        hidden_states, idx[:, :, c][..., None], axis=1)
    head = (take(0) + take(1)) * 0.5
    tail = (take(2) + take(3)) * 0.5
    feat = jnp.concatenate([head, tail, head * tail], axis=-1)
    return feat @ weight.T + bias


if __name__ == "__main__":
    # Small shapes consistent with the module.
    B, P, S, H, R = 2, 8, 16, 32, 5

    key = jax.random.PRNGKey(0)
    k_pairs, k_hs, k_w, k_b = jax.random.split(key, 4)

    pairs = jax.random.randint(k_pairs, (B, P, 2, 2), 0, S, dtype=jnp.int32)
    hidden_states = jax.random.normal(k_hs, (B, S, H), dtype=jnp.float32)

    # nn.Linear(3H, R) init: uniform(-1/sqrt(3H), 1/sqrt(3H))
    bound = 1.0 / float(jnp.sqrt(3.0 * H))
    weight = jax.random.uniform(k_w, (R, 3 * H), jnp.float32, -bound, bound)
    bias = jax.random.uniform(k_b, (R,), jnp.float32, -bound, bound)

    ref = reference(pairs, hidden_states, weight, bias)

    # f32 MXU path (exact vs. reference).
    logits = graph_reconstructor(pairs, hidden_states, weight, bias)
    jax.block_until_ready(logits)
    assert logits.shape == (B, P, R)
    assert jnp.allclose(logits, ref, atol=1e-5, rtol=1e-5), "f32 mismatch"

    # bf16-operand MXU path (v6e/v7x optimization), looser tolerance.
    logits_bf16 = graph_reconstructor(pairs, hidden_states, weight, bias,
                                      use_bf16_mxu=True)
    jax.block_until_ready(logits_bf16)
    assert jnp.allclose(logits_bf16, ref, atol=5e-2, rtol=5e-2), "bf16 mismatch"

    print("KERNEL_OK")
</pallas_src>

<mosaic_0001>
module attributes {stable_mosaic.version = 11 : i64} {
  func.func @graph_reconstructor_kernel(%arg0: i32, %arg1: i32, %arg2: memref<1x16x2xi32, #tpu.memory_space<vmem>>, %arg3: memref<1x16x32xf32, #tpu.memory_space<vmem>>, %arg4: memref<32x128xf32, #tpu.memory_space<vmem>>, %arg5: memref<32x128xf32, #tpu.memory_space<vmem>>, %arg6: memref<32x128xf32, #tpu.memory_space<vmem>>, %arg7: memref<1x128xf32, #tpu.memory_space<vmem>>, %arg8: memref<1x8x128xf32, #tpu.memory_space<vmem>>) attributes {dimension_semantics = [#tpu.dimension_semantics<parallel>, #tpu.dimension_semantics<parallel>], iteration_bounds = array<i64: 2, 1>, scalar_prefetch = 0 : i64, scratch_operands = 0 : i64, tpu.core_type = #tpu.core_type<tc>, window_params = [{transform_indices = @transform_0, window_bounds = array<i64: 1, 16, 2>}, {transform_indices = @transform_1, window_bounds = array<i64: 1, 16, 32>}, {pipeline_mode = #tpu.pipeline_mode<synchronous>, transform_indices = @transform_2, window_bounds = array<i64: 32, 128>}, {pipeline_mode = #tpu.pipeline_mode<synchronous>, transform_indices = @transform_3, window_bounds = array<i64: 32, 128>}, {pipeline_mode = #tpu.pipeline_mode<synchronous>, transform_indices = @transform_4, window_bounds = array<i64: 32, 128>}, {pipeline_mode = #tpu.pipeline_mode<synchronous>, transform_indices = @transform_5, window_bounds = array<i64: 1, 128>}, {transform_indices = @transform_6, window_bounds = array<i64: 1, 8, 128>}]} {
    %c0 = arith.constant 0 : index
    %c0_0 = arith.constant 0 : index
    %c0_1 = arith.constant 0 : index
    %0 = vector.load %arg2[%c0, %c0_0, %c0_1] : memref<1x16x2xi32, #tpu.memory_space<vmem>>, vector<1x16x2xi32>
    %1 = vector.shape_cast %0 : vector<1x16x2xi32> to vector<16x2xi32>
    %c0_2 = arith.constant 0 : index
    %c0_3 = arith.constant 0 : index
    %c0_4 = arith.constant 0 : index
    %2 = vector.load %arg3[%c0_2, %c0_3, %c0_4] : memref<1x16x32xf32, #tpu.memory_space<vmem>>, vector<1x16x32xf32>
    %3 = vector.shape_cast %2 : vector<1x16x32xf32> to vector<16x32xf32>
    %4 = vector.extract_strided_slice %1 {offsets = [0, 0], sizes = [16, 1], strides = [1, 1]} : vector<16x2xi32> to vector<16x1xi32>
    %5 = vector.extract_strided_slice %1 {offsets = [0, 1], sizes = [16, 1], strides = [1, 1]} : vector<16x2xi32> to vector<16x1xi32>
    %6 = tpu.iota {dimensions = array<i32: 1>} : vector<16x16xi32>
    %7 = vector.broadcast %4 : vector<16x1xi32> to vector<16x16xi32>
    %8 = arith.cmpi eq, %6, %7 : vector<16x16xi32>
    %9 = arith.extui %8 : vector<16x16xi1> to vector<16x16xi32>
    %10 = arith.sitofp %9 : vector<16x16xi32> to vector<16x16xf32>
    %11 = vector.broadcast %5 : vector<16x1xi32> to vector<16x16xi32>
    %12 = arith.cmpi eq, %6, %11 : vector<16x16xi32>
    %13 = arith.extui %12 : vector<16x16xi1> to vector<16x16xi32>
    %14 = arith.sitofp %13 : vector<16x16xi32> to vector<16x16xf32>
    %15 = arith.addf %10, %14 : vector<16x16xf32>
    %cst = arith.constant 5.000000e-01 : f32
    %16 = vector.broadcast %cst : f32 to vector<16x16xf32>
    %17 = arith.mulf %15, %16 : vector<16x16xf32>
    %cst_5 = arith.constant dense<0.000000e+00> : vector<16x32xf32>
    %18 = tpu.matmul %17, %3, %cst_5 {dimension_numbers = #tpu.dot_dimension_numbers<[1], [0], [0], [1], [0, 0, 1, 1], [], []>} : vector<16x16xf32>, vector<16x32xf32>, vector<16x32xf32> -> vector<16x32xf32>
    %19 = vector.extract_strided_slice %18 {offsets = [0, 0], sizes = [8, 32], strides = [1, 1]} : vector<16x32xf32> to vector<8x32xf32>
    %20 = vector.extract_strided_slice %18 {offsets = [8, 0], sizes = [8, 32], strides = [1, 1]} : vector<16x32xf32> to vector<8x32xf32>
    %21 = arith.mulf %19, %20 : vector<8x32xf32>
    %c0_6 = arith.constant 0 : index
    %c0_7 = arith.constant 0 : index
    %22 = vector.load %arg4[%c0_6, %c0_7] : memref<32x128xf32, #tpu.memory_space<vmem>>, vector<32x128xf32>
    %cst_8 = arith.constant dense<0.000000e+00> : vector<8x128xf32>
    %23 = tpu.matmul %19, %22, %cst_8 {dimension_numbers = #tpu.dot_dimension_numbers<[1], [0], [0], [1], [0, 0, 1, 1], [], []>} : vector<8x32xf32>, vector<32x128xf32>, vector<8x128xf32> -> vector<8x128xf32>
    %c0_9 = arith.constant 0 : index
    %c0_10 = arith.constant 0 : index
    %24 = vector.load %arg5[%c0_9, %c0_10] : memref<32x128xf32, #tpu.memory_space<vmem>>, vector<32x128xf32>
    %cst_11 = arith.constant dense<0.000000e+00> : vector<8x128xf32>
    %25 = tpu.matmul %20, %24, %cst_11 {dimension_numbers = #tpu.dot_dimension_numbers<[1], [0], [0], [1], [0, 0, 1, 1], [], []>} : vector<8x32xf32>, vector<32x128xf32>, vector<8x128xf32> -> vector<8x128xf32>
    %26 = arith.addf %23, %25 : vector<8x128xf32>
    %c0_12 = arith.constant 0 : index
    %c0_13 = arith.constant 0 : index
    %27 = vector.load %arg6[%c0_12, %c0_13] : memref<32x128xf32, #tpu.memory_space<vmem>>, vector<32x128xf32>
    %cst_14 = arith.constant dense<0.000000e+00> : vector<8x128xf32>
    %28 = tpu.matmul %21, %27, %cst_14 {dimension_numbers = #tpu.dot_dimension_numbers<[1], [0], [0], [1], [0, 0, 1, 1], [], []>} : vector<8x32xf32>, vector<32x128xf32>, vector<8x128xf32> -> vector<8x128xf32>
    %29 = arith.addf %26, %28 : vector<8x128xf32>
    %c0_15 = arith.constant 0 : index
    %c0_16 = arith.constant 0 : index
    %30 = vector.load %arg7[%c0_15, %c0_16] : memref<1x128xf32, #tpu.memory_space<vmem>>, vector<1x128xf32>
    %31 = vector.broadcast %30 : vector<1x128xf32> to vector<8x128xf32>
    %32 = arith.addf %29, %31 : vector<8x128xf32>
    %c0_17 = arith.constant 0 : index
    %c0_18 = arith.constant 0 : index
    %c0_19 = arith.constant 0 : index
    %33 = vector.load %arg8[%c0_17, %c0_18, %c0_19] : memref<1x8x128xf32, #tpu.memory_space<vmem>>, vector<1x8x128xf32>
    %34 = vector.shape_cast %33 : vector<1x8x128xf32> to vector<8x128xf32>
    %35 = vector.shape_cast %32 : vector<8x128xf32> to vector<1x8x128xf32>
    tpu.vector_store %arg8[%c0_17, %c0_18, %c0_19], %35 {strides = array<i32>} : memref<1x8x128xf32, #tpu.memory_space<vmem>>, vector<1x8x128xf32>,
    return
  }
  func.func @transform_0(%arg0: i32, %arg1: i32) -> (i32, i32, i32) {
    %c0_i32 = arith.constant 0 : i32
    %c0_i32_0 = arith.constant 0 : i32
    return %arg0, %arg1, %c0_i32 : i32, i32, i32
  }
  func.func @transform_1(%arg0: i32, %arg1: i32) -> (i32, i32, i32) {
    %c0_i32 = arith.constant 0 : i32
    %c0_i32_0 = arith.constant 0 : i32
    %c0_i32_1 = arith.constant 0 : i32
    return %arg0, %c0_i32, %c0_i32_0 : i32, i32, i32
  }
  func.func @transform_2(%arg0: i32, %arg1: i32) -> (i32, i32) {
    %c0_i32 = arith.constant 0 : i32
    %c0_i32_0 = arith.constant 0 : i32
    %c0_i32_1 = arith.constant 0 : i32
    return %c0_i32, %c0_i32_0 : i32, i32
  }
  func.func @transform_3(%arg0: i32, %arg1: i32) -> (i32, i32) {
    %c0_i32 = arith.constant 0 : i32
    %c0_i32_0 = arith.constant 0 : i32
    %c0_i32_1 = arith.constant 0 : i32
    return %c0_i32, %c0_i32_0 : i32, i32
  }
  func.func @transform_4(%arg0: i32, %arg1: i32) -> (i32, i32) {
    %c0_i32 = arith.constant 0 : i32
    %c0_i32_0 = arith.constant 0 : i32
    %c0_i32_1 = arith.constant 0 : i32
    return %c0_i32, %c0_i32_0 : i32, i32
  }
  func.func @transform_5(%arg0: i32, %arg1: i32) -> (i32, i32) {
    %c0_i32 = arith.constant 0 : i32
    %c0_i32_0 = arith.constant 0 : i32
    %c0_i32_1 = arith.constant 0 : i32
    return %c0_i32, %c0_i32_0 : i32, i32
  }
  func.func @transform_6(%arg0: i32, %arg1: i32) -> (i32, i32, i32) {
    %c0_i32 = arith.constant 0 : i32
    %c0_i32_0 = arith.constant 0 : i32
    return %arg0, %arg1, %c0_i32 : i32, i32, i32
  }
}

</mosaic_0001>

<llo_original>
// kernel: graph_reconstructor.1
$region0: #{graph_reconstructor.1}
  #allocation0 [shape = 'u32[]', space=smem, size = 0x4, offset = 0x4, fixed_abs, tag = 'smem constant byte address 0x4 - core index']
  #allocation1 [shape = 'u32[144,128]{1,0:T(1,128)}', space=vmem, size = 0x12000, scoped, tag = 'internal scratch']
  %s0 = inlined_call_operand.vmem [shape: s32[2,16,2], index: 0, kind: input, shape index: {}]
  %s1 = inlined_call_operand.vmem [shape: f32[2,16,32], index: 1, kind: input, shape index: {}]
  %s2 = inlined_call_operand.vmem [shape: f32[32,128], index: 2, kind: input, shape index: {}]
  %s3 = inlined_call_operand.vmem [shape: f32[32,128], index: 3, kind: input, shape index: {}]
  %s4 = inlined_call_operand.vmem [shape: f32[32,128], index: 4, kind: input, shape index: {}]
  %s5 = inlined_call_operand.vmem [shape: f32[1,128], index: 5, kind: input, shape index: {}]
  %s6 = inlined_call_operand.vmem [shape: f32[2,8,128], index: 6, kind: output, shape index: {}]
  %s7 = sld [smem:[#allocation0]]
  $region57: #{graph_reconstructor.1} parent=0
    _
  %s9 = ssub.s32 1, %s7
  %s10 = scalar_select 0, %s9, %s7
  loop: start=0, step=1, limit=4
  $region2: #{graph_reconstructor.1} parent=0 // loop_pre_header
    _
  $region3: #{graph_reconstructor.1} parent=0 // loop_header
    %s12 = sphi 0, %s16
    %p13 = scmp.ge.s32.totalorder %s12, 4
    %s19 = sphi 0, %s31
    %s20 = sphi 0, %s27
    %s21 = sphi 0, %s19
    %s22 = sphi 0, %s20
    %s23 = sphi 0, %s21
    %s24 = sphi 0, %s22
    %s36 = sphi 0, %s38
    %s39 = sphi 0, %s36
    %s40 = sphi 0, %s39
    %s56 = sphi 0, %s40
    %s62 = sphi 0, %s64
    %s65 = sphi 0, %s62
    %s66 = sphi 0, %s65
    %s82 = sphi 0, %s66
    %s86 = sphi 0, %s86
    %s88 = sphi 0, %s86
    %s89 = sphi 0, %s88
    %s103 = sphi 0, %s89
    %s107 = sphi 0, %s107
    %s109 = sphi 0, %s107
    %s110 = sphi 0, %s109
    %s124 = sphi 0, %s110
    %s128 = sphi 0, %s128
    %s130 = sphi 0, %s128
    %s131 = sphi 0, %s130
    %s145 = sphi 0, %s131
    %s149 = sphi 0, %s149
    %s151 = sphi 0, %s149
    %s152 = sphi 0, %s151
    %s166 = sphi 0, %s152
    %s174 = sphi 0, %s176
    %s177 = sphi 0, %s174
    %s178 = sphi 0, %s177
    %s194 = sphi 0, %s178
  $region4: #{graph_reconstructor.1} parent=0 // loop_header_branch
    %15 = sbr.rel (%p13) target = $region8
  $region5: #{graph_reconstructor.1} parent=0 // loop_body
    %s17 = ssub.s32 %s12, 1
    %s18 = ssub.s32 %s12, 2
    %s25 = sadd.s32 1, %s20
    %p26 = scmp.ge.s32.totalorder %s25, 1
    %s27 = scalar_select %p26, 0, %s25
    %s28 = sadd.s32 1, %s19
    %s29 = scalar_select %p26, %s28, %s19
    %p30 = scmp.ge.s32.totalorder %s29, 2
    %s31 = scalar_select %p30, 0, %s29
    %s32 = ssub.s32 %s19, %s31
    %s33 = ssub.s32 %s20, %s27
    %s34 = sor.u32 %s32, %s33
    %p35 = scmp.eq.s32.totalorder %s34, 0
    %s37 = sadd.s32 %s36, 1
    %s38 = scalar_select %p35, %s36, %s37
    %p41 = pneg %p35
    %p42 = scmp.eq.s32.totalorder %s12, 1
    %p43 = por %p41, %p42
    %p44 = scmp.ne.s32.totalorder %s36, %s39
    %p45 = scmp.eq.s32.totalorder %s12, 0
    %p46 = por %p44, %p45
    %p47 = scmp.ne.s32.totalorder %s36, %s39
    %p48 = scmp.eq.s32.totalorder %s17, 1
    %p49 = por %p47, %p48
    %p50 = scmp.ne.s32.totalorder %s39, %s40
    %p51 = scmp.eq.s32.totalorder %s17, 0
    %p52 = por %p50, %p51
    %p53 = scmp.ne.s32.totalorder %s39, %s40
    %p54 = scmp.eq.s32.totalorder %s18, 1
    %p55 = por %p53, %p54
    %p57 = scmp.ne.s32.totalorder %s40, %s56
    %p58 = scmp.eq.s32.totalorder %s18, 0
    %p59 = por %p57, %p58
    %s60 = ssub.s32 %s19, %s31
    %p61 = scmp.eq.s32.totalorder %s60, 0
    %s63 = sadd.s32 %s62, 1
    %s64 = scalar_select %p61, %s62, %s63
    %p67 = pneg %p61
    %p68 = scmp.eq.s32.totalorder %s12, 1
    %p69 = por %p67, %p68
    %p70 = scmp.ne.s32.totalorder %s62, %s65
    %p71 = scmp.eq.s32.totalorder %s12, 0
    %p72 = por %p70, %p71
    %p73 = scmp.ne.s32.totalorder %s62, %s65
    %p74 = scmp.eq.s32.totalorder %s17, 1
    %p75 = por %p73, %p74
    %p76 = scmp.ne.s32.totalorder %s65, %s66
    %p77 = scmp.eq.s32.totalorder %s17, 0
    %p78 = por %p76, %p77
    %p79 = scmp.ne.s32.totalorder %s65, %s66
    %p80 = scmp.eq.s32.totalorder %s18, 1
    %p81 = por %p79, %p80
    %p83 = scmp.ne.s32.totalorder %s66, %s82
    %p84 = scmp.eq.s32.totalorder %s18, 0
    %p85 = por %p83, %p84
    %s87 = sadd.s32 %s86, 1
    %p90 = scmp.eq.s32.totalorder %s12, 1
    %p91 = scmp.ne.s32.totalorder %s86, %s88
    %p92 = scmp.eq.s32.totalorder %s12, 0
    %p93 = por %p91, %p92
    %p94 = scmp.ne.s32.totalorder %s86, %s88
    %p95 = scmp.eq.s32.totalorder %s17, 1
    %p96 = por %p94, %p95
    %p97 = scmp.ne.s32.totalorder %s88, %s89
    %p98 = scmp.eq.s32.totalorder %s17, 0
    %p99 = por %p97, %p98
    %p100 = scmp.ne.s32.totalorder %s88, %s89
    %p101 = scmp.eq.s32.totalorder %s18, 1
    %p102 = por %p100, %p101
    %p104 = scmp.ne.s32.totalorder %s89, %s103
    %p105 = scmp.eq.s32.totalorder %s18, 0
    %p106 = por %p104, %p105
    %s108 = sadd.s32 %s107, 1
    %p111 = scmp.eq.s32.totalorder %s12, 1
    %p112 = scmp.ne.s32.totalorder %s107, %s109
    %p113 = scmp.eq.s32.totalorder %s12, 0
    %p114 = por %p112, %p113
    %p115 = scmp.ne.s32.totalorder %s107, %s109
    %p116 = scmp.eq.s32.totalorder %s17, 1
    %p117 = por %p115, %p116
    %p118 = scmp.ne.s32.totalorder %s109, %s110
    %p119 = scmp.eq.s32.totalorder %s17, 0
    %p120 = por %p118, %p119
    %p121 = scmp.ne.s32.totalorder %s109, %s110
    %p122 = scmp.eq.s32.totalorder %s18, 1
    %p123 = por %p121, %p122
    %p125 = scmp.ne.s32.totalorder %s110, %s124
    %p126 = scmp.eq.s32.totalorder %s18, 0
    %p127 = por %p125, %p126
    %s129 = sadd.s32 %s128, 1
    %p132 = scmp.eq.s32.totalorder %s12, 1
    %p133 = scmp.ne.s32.totalorder %s128, %s130
    %p134 = scmp.eq.s32.totalorder %s12, 0
    %p135 = por %p133, %p134
    %p136 = scmp.ne.s32.totalorder %s128, %s130
    %p137 = scmp.eq.s32.totalorder %s17, 1
    %p138 = por %p136, %p137
    %p139 = scmp.ne.s32.totalorder %s130, %s131
    %p140 = scmp.eq.s32.totalorder %s17, 0
    %p141 = por %p139, %p140
    %p142 = scmp.ne.s32.totalorder %s130, %s131
    %p143 = scmp.eq.s32.totalorder %s18, 1
    %p144 = por %p142, %p143
    %p146 = scmp.ne.s32.totalorder %s131, %s145
    %p147 = scmp.eq.s32.totalorder %s18, 0
    %p148 = por %p146, %p147
    %s150 = sadd.s32 %s149, 1
    %p153 = scmp.eq.s32.totalorder %s12, 1
    %p154 = scmp.ne.s32.totalorder %s149, %s151
    %p155 = scmp.eq.s32.totalorder %s12, 0
    %p156 = por %p154, %p155
    %p157 = scmp.ne.s32.totalorder %s149, %s151
    %p158 = scmp.eq.s32.totalorder %s17, 1
    %p159 = por %p157, %p158
    %p160 = scmp.ne.s32.totalorder %s151, %s152
    %p161 = scmp.eq.s32.totalorder %s17, 0
    %p162 = por %p160, %p161
    %p163 = scmp.ne.s32.totalorder %s151, %s152
    %p164 = scmp.eq.s32.totalorder %s18, 1
    %p165 = por %p163, %p164
    %p167 = scmp.ne.s32.totalorder %s152, %s166
    %p168 = scmp.eq.s32.totalorder %s18, 0
    %p169 = por %p167, %p168
    %s170 = ssub.s32 %s19, %s31
    %s171 = ssub.s32 %s20, %s27
    %s172 = sor.u32 %s170, %s171
    %p173 = scmp.eq.s32.totalorder %s172, 0
    %s175 = sadd.s32 %s174, 1
    %s176 = scalar_select %p173, %s174, %s175
    %p179 = pneg %p173
    %p180 = scmp.eq.s32.totalorder %s12, 1
    %p181 = por %p179, %p180
    %p182 = scmp.ne.s32.totalorder %s174, %s177
    %p183 = scmp.eq.s32.totalorder %s12, 0
    %p184 = por %p182, %p183
    %p185 = scmp.ne.s32.totalorder %s174, %s177
    %p186 = scmp.eq.s32.totalorder %s17, 1
    %p187 = por %p185, %p186
    %p188 = scmp.ne.s32.totalorder %s177, %s178
    %p189 = scmp.eq.s32.totalorder %s17, 0
    %p190 = por %p188, %p189
    %p191 = scmp.ne.s32.totalorder %s177, %s178
    %p192 = scmp.eq.s32.totalorder %s18, 1
    %p193 = por %p191, %p192
    %p195 = scmp.ne.s32.totalorder %s178, %s194
    %p196 = scmp.eq.s32.totalorder %s18, 0
    %p197 = por %p195, %p196
    %p198 = scmp.le.s32.totalorder 1, %s12
    %p199 = scmp.lt.s32.totalorder %s12, 3
    %p200 = pnand %p198, %p199
    %p201 = pneg %p200
    // Predicated region
    $region9: #{graph_reconstructor.1} parent=5 // pred_check
      _
    $region10: #{graph_reconstructor.1} parent=5 // pred_check_branch
      %203 = sbr.rel (%p200) target = $region12
    $region11: #{graph_reconstructor.1} parent=5 // pred_region
      %s204 = ssub.s32 %s12, 1
      // Predicated region
      $region13: #{graph_reconstructor.1} parent=11 // pred_check
        %p205 = pneg %p99
      $region14: #{graph_reconstructor.1} parent=11 // pred_check_branch
        %207 = sbr.rel (%p205) target = $region16
      $region15: #{graph_reconstructor.1} parent=11 // pred_region
        _
      $region16: #{graph_reconstructor.1} parent=11 // pred_fallthru
        _
      // Predicated region
      $region17: #{graph_reconstructor.1} parent=11 // pred_check
        %p208 = pneg %p120
      $region18: #{graph_reconstructor.1} parent=11 // pred_check_branch
        %210 = sbr.rel (%p208) target = $region20
      $region19: #{graph_reconstructor.1} parent=11 // pred_region
        _
      $region20: #{graph_reconstructor.1} parent=11 // pred_fallthru
        _
      // Predicated region
      $region21: #{graph_reconstructor.1} parent=11 // pred_check
        %p211 = pneg %p141
      $region22: #{graph_reconstructor.1} parent=11 // pred_check_branch
        %213 = sbr.rel (%p211) target = $region24
      $region23: #{graph_reconstructor.1} parent=11 // pred_region
        _
      $region24: #{graph_reconstructor.1} parent=11 // pred_fallthru
        _
      // Predicated region
      $region25: #{graph_reconstructor.1} parent=11 // pred_check
        %p214 = pneg %p162
      $region26: #{graph_reconstructor.1} parent=11 // pred_check_branch
        %216 = sbr.rel (%p214) target = $region28
      $region27: #{graph_reconstructor.1} parent=11 // pred_region
        _
      $region28: #{graph_reconstructor.1} parent=11 // pred_fallthru
        _
    $region12: #{graph_reconstructor.1} parent=5 // pred_fallthru
      _
    %p217 = scmp.lt.s32.totalorder %s12, 2
    // Predicated region
    $region29: #{graph_reconstructor.1} parent=5 // pred_check
      %p218 = pneg %p217
    $region30: #{graph_reconstructor.1} parent=5 // pred_check_branch
      %220 = sbr.rel (%p218) target = $region32
    $region31: #{graph_reconstructor.1} parent=5 // pred_region
      // Predicated region
      $region33: #{graph_reconstructor.1} parent=31 // pred_check
        %p221 = pneg %p46
      $region34: #{graph_reconstructor.1} parent=31 // pred_check_branch
        %223 = sbr.rel (%p221) target = $region36
      $region35: #{graph_reconstructor.1} parent=31 // pred_region
        %s224 = smul.u32 2, %s20
        %p225 = scmp.lt.s32.totalorder %s19, 1
        %s226 = scalar_select %p225, %s19, 1
        %p227 = scmp.lt.s32.totalorder %s224, 1
        %s228 = scalar_select %p227, %s224, 1
        %s229 = smul.addr %s226, 2
        %s230 = sadd.s32 %s228, %s229
        %s231 = smul.addr %s230, 8
        %s232 = scalar_lea.vmem %s0, %s231
        %s233 = smul.u32 2, %s20
      $region36: #{graph_reconstructor.1} parent=31 // pred_fallthru
        _
      // Predicated region
      $region37: #{graph_reconstructor.1} parent=31 // pred_check
        %p234 = pneg %p72
      $region38: #{graph_reconstructor.1} parent=31 // pred_check_branch
        %236 = sbr.rel (%p234) target = $region40
      $region39: #{graph_reconstructor.1} parent=31 // pred_region
        %p237 = scmp.lt.s32.totalorder %s19, 1
        %s238 = scalar_select %p237, %s19, 1
        %s239 = smul.addr %s238, 2
        %s240 = smul.addr %s239, 8
        %s241 = scalar_lea.vmem %s1, %s240
      $region40: #{graph_reconstructor.1} parent=31 // pred_fallthru
        _
    $region32: #{graph_reconstructor.1} parent=5 // pred_fallthru
      _
    %p242 = scmp.le.s32.totalorder 1, %s12
    %p243 = scmp.lt.s32.totalorder %s12, 3
    %p244 = pnand %p242, %p243
    %p245 = pneg %p244
    // Predicated region
    $region41: #{graph_reconstructor.1} parent=5 // pred_check
      _
    $region42: #{graph_reconstructor.1} parent=5 // pred_check_branch
      %247 = sbr.rel (%p244) target = $region44
    $region43: #{graph_reconstructor.1} parent=5 // pred_region
      %s248 = ssub.s32 %s12, 1
      %s249 = smul.u32 2, %s22
      %p250 = scmp.lt.s32.totalorder %s21, 1
      %s251 = scalar_select %p250, %s21, 1
      %p252 = scmp.lt.s32.totalorder %s249, 1
      %s253 = scalar_select %p252, %s249, 1
      %s254 = smul.addr %s251, 2
      %s255 = sadd.s32 %s253, %s254
      %s256 = smul.addr %s255, 8
      %s257 = scalar_lea.vmem %s0, %s256
      %p258 = pneg %p52
      %p259 = pneg %p49
      %p260 = scmp.lt.s32.totalorder %s21, 1
      %s261 = scalar_select %p260, %s21, 1
      %s262 = smul.addr %s261, 2
      %s263 = smul.addr %s262, 8
      %s264 = scalar_lea.vmem %s1, %s263
      %p265 = pneg %p78
      %p266 = pneg %p75
      %p267 = pneg %p99
      %p268 = pneg %p96
      %p269 = pneg %p120
      %p270 = pneg %p117
      %p271 = pneg %p141
      %p272 = pneg %p138
      %p273 = pneg %p162
      %p274 = pneg %p159
      %p275 = pneg %p190
      %p276 = pneg %p187
      %p277 = scmp.lt.s32.totalorder %s21, 1
      %s278 = scalar_select %p277, %s21, 1
      %p279 = scmp.lt.s32.totalorder %s22, 0
      %s280 = scalar_select %p279, %s22, 0
      %s281 = sadd.s32 %s280, %s278
      %s282 = smul.addr %s281, 8
      %s283 = scalar_lea.vmem %s6, %s282
      %s284 = smul.u32 2, %s22
      %p285 = scmp.lt.s32.totalorder %s21, 1
      %s286 = scalar_select %p285, %s21, 1
      %p287 = scmp.lt.s32.totalorder %s284, 1
      %s288 = scalar_select %p287, %s284, 1
      %s289 = smul.addr %s286, 2
      %s290 = sadd.s32 %s288, %s289
      %s291 = smul.addr %s290, 8
      %s292 = scalar_lea.vmem %s0, %s291
      %s293 = smul.u32 2, %s22
      %p294 = scmp.lt.s32.totalorder %s21, 1
      %s295 = scalar_select %p294, %s21, 1
      %s296 = smul.addr %s295, 2
      %s297 = smul.addr %s296, 8
      %s298 = scalar_lea.vmem %s1, %s297
      %p299 = scmp.lt.s32.totalorder %s21, 1
      %s300 = scalar_select %p299, %s21, 1
      %p301 = scmp.lt.s32.totalorder %s22, 0
      %s302 = scalar_select %p301, %s22, 0
      %s303 = sadd.s32 %s302, %s300
      %s304 = smul.addr %s303, 8
      %s305 = scalar_lea.vmem %s6, %s304
      %v306 = vld [vmem:[%s292] sm:$0xff]
      %v307 = vld [vmem:[%s292 + $0x8] sm:$0xff]
      %v308 = vld [vmem:[%s298] sm:$0xff]
      %v309 = vld [vmem:[%s298 + $0x8] sm:$0xff]
      %v310 = vlaneseq
      %v311 = vand.u32 %v310, 127
      %312 = vset.pattern.permute.xlu0 0
      %313 = vperm.xlu0 %312, %v306
      %v314 = vpop.permute.xlu0 %313
      %315 = vset.pattern.permute.xlu0 0
      %316 = vperm.xlu0 %315, %v307
      %v317 = vpop.permute.xlu0 %316
      %vm318 = vcmp.eq.s32.totalorder %v311, %v314
      %vm319 = vcmp.eq.s32.totalorder %v311, %v317
      %v320 = vsel %vm318, 1, 0
      %v321 = vsel %vm319, 1, 0
      %v322 = vcvt.s32.f32 %v320
      %v323 = vcvt.s32.f32 %v321
      %324 = vset.pattern.permute.xlu0 1
      %325 = vperm.xlu0 %324, %v306
      %v326 = vpop.permute.xlu0 %325
      %327 = vset.pattern.permute.xlu0 1
      %328 = vperm.xlu0 %327, %v307
      %v329 = vpop.permute.xlu0 %328
      %vm330 = vcmp.eq.s32.totalorder %v311, %v326
      %vm331 = vcmp.eq.s32.totalorder %v311, %v329
      %v332 = vsel %vm330, 1, 0
      %v333 = vsel %vm331, 1, 0
      %v334 = vcvt.s32.f32 %v332
      %v335 = vcvt.s32.f32 %v333
      %v336 = vadd.f32 %v322, %v334
      %v337 = vadd.f32 %v323, %v335
      %v338 = vmul.f32 %v336, 0.5
      %v339 = vmul.f32 %v337, 0.5
      %vm340 = vcmask 130048
      %v342 = vsel %vm340, %v338, 0
      %v345 = vsel %vm340, %v339, 0
      %347 = vmatprep.subr.mxu0 0.0
      %348 = vmatpush1.msra.mxu0 %v308
      %349 = vmatprep.subr.mxu0 0.0
      %350 = vmatpush1.msra.mxu0 %v309
      %351 = vmatprep.subr.mxu0 0.0
      %352 = vmatpush1.msra.mxu0 0.0
      %353 = vmatprep.subr.mxu0 0.0
      %354 = vmatpush1.msra.mxu0 0.0
      %355 = vmatprep.subr.mxu0 0.0
      %356 = vmatpush1.msra.mxu0 0.0
      %357 = vmatprep.subr.mxu0 0.0
      %358 = vmatpush1.msra.mxu0 0.0
      %359 = vmatprep.subr.mxu0 0.0
      %360 = vmatpush1.msra.mxu0 0.0
      %361 = vmatprep.subr.mxu0 0.0
      %362 = vmatpush1.msra.mxu0 0.0
      %363 = vmatprep.subr.mxu0 0.0
      %364 = vmatpush1.msra.mxu0 0.0
      %365 = vmatprep.subr.mxu0 0.0
      %366 = vmatpush1.msra.mxu0 0.0
      %367 = vmatprep.subr.mxu0 0.0
      %368 = vmatpush1.msra.mxu0 0.0
      %369 = vmatprep.subr.mxu0 0.0
      %370 = vmatpush1.msra.mxu0 0.0
      %371 = vmatprep.subr.mxu0 0.0
      %372 = vmatpush1.msra.mxu0 0.0
      %373 = vmatprep.subr.mxu0 0.0
      %374 = vmatpush1.msra.mxu0 0.0
      %375 = vmatprep.subr.mxu0 0.0
      %376 = vmatpush1.msra.mxu0 0.0
      %377 = vmatprep.subr.mxu0 0.0
      %378 = vmatpush1.msra.mxu0 0.0
      %379 = vmatprep.subr.mxu0 0.0
      %380 = vmatpush1.msra.mxu0 0.0
      %381 = vmatprep.subr.mxu0 0.0
      %382 = vmatpush1.msra.mxu0 0.0
      %383 = vmatprep.subr.mxu0 0.0
      %384 = vmatpush1.msra.mxu0 0.0
      %385 = vmatprep.subr.mxu0 0.0
      %386 = vmatpush1.msra.mxu0 0.0
      %387 = vmatprep.subr.mxu0 0.0
      %388 = vmatpush1.msra.mxu0 0.0
      %389 = vmatprep.subr.mxu0 0.0
      %390 = vmatpush1.msra.mxu0 0.0
      %391 = vmatprep.subr.mxu0 0.0
      %392 = vmatpush1.msra.mxu0 0.0
      %393 = vmatprep.subr.mxu0 0.0
      %394 = vmatpush1.msra.mxu0 0.0
      %395 = vmatprep.subr.mxu0 0.0
      %396 = vmatpush1.msra.mxu0 0.0
      %397 = vmatprep.subr.mxu0 0.0
      %398 = vmatpush1.msra.mxu0 0.0
      %399 = vmatprep.subr.mxu0 0.0
      %400 = vmatpush1.msra.mxu0 0.0
      %401 = vmatprep.subr.mxu0 0.0
      %402 = vmatpush1.msra.mxu0 0.0
      %403 = vmatprep.subr.mxu0 0.0
      %404 = vmatpush1.msra.mxu0 0.0
      %405 = vmatprep.subr.mxu0 0.0
      %406 = vmatpush1.msra.mxu0 0.0
      %407 = vmatprep.subr.mxu0 0.0
      %408 = vmatpush1.msra.mxu0 0.0
      %409 = vmatprep.subr.mxu0 0.0
      %410 = vmatpush1.msra.mxu0 0.0
      %411 = vmatprep.mubr.f32.mxu0 0.0
      %412 = vmatmul.mubr.f32.gmra.mrb[0].mxu0 %v342
      %v413 = vpop.f32.mrb[0].mxu0
      %v414 = vadd.f32 0.0, %v413
      %v415 = vpop.f32.mrb[0].mxu0
      %416 = vmatprep.mubr.f32.mxu0 0.0
      %417 = vmatmul.mubr.f32.gmra.mrb[0].mxu0 %v345
      %v418 = vpop.f32.mrb[0].mxu0
      %v419 = vadd.f32 0.0, %v418
      %v420 = vpop.f32.mrb[0].mxu0
      %421 = vdwg.mxu0
      %v422 = vmul.f32 %v414, %v419
      %v423 = vld [vmem:[%s2] sm:$0xff]
      %v424 = vld [vmem:[%s2 + $0x8] sm:$0xff]
      %v425 = vld [vmem:[%s2 + $0x10] sm:$0xff]
      %v426 = vld [vmem:[%s2 + $0x18] sm:$0xff]
      %v427 = vld [vmem:[%s3] sm:$0xff]
      %v428 = vld [vmem:[%s3 + $0x8] sm:$0xff]
      %v429 = vld [vmem:[%s3 + $0x10] sm:$0xff]
      %v430 = vld [vmem:[%s3 + $0x18] sm:$0xff]
      %vm431 = vcmask 261120
      %v433 = vsel %vm431, %v419, 0
      %435 = vmatprep.subr.mxu0 0.0
      %436 = vmatpush1.msra.mxu0 %v427
      %437 = vmatprep.subr.mxu0 0.0
      %438 = vmatpush1.msra.mxu0 %v428
      %439 = vmatprep.subr.mxu0 0.0
      %440 = vmatpush1.msra.mxu0 %v429
      %441 = vmatprep.subr.mxu0 0.0
      %442 = vmatpush1.msra.mxu0 %v430
      %443 = vmatprep.subr.mxu0 0.0
      %444 = vmatpush1.msra.mxu0 0.0
      %445 = vmatprep.subr.mxu0 0.0
      %446 = vmatpush1.msra.mxu0 0.0
      %447 = vmatprep.subr.mxu0 0.0
      %448 = vmatpush1.msra.mxu0 0.0
      %449 = vmatprep.subr.mxu0 0.0
      %450 = vmatpush1.msra.mxu0 0.0
      %451 = vmatprep.subr.mxu0 0.0
      %452 = vmatpush1.msra.mxu0 0.0
      %453 = vmatprep.subr.mxu0 0.0
      %454 = vmatpush1.msra.mxu0 0.0
      %455 = vmatprep.subr.mxu0 0.0
      %456 = vmatpush1.msra.mxu0 0.0
      %457 = vmatprep.subr.mxu0 0.0
      %458 = vmatpush1.msra.mxu0 0.0
      %459 = vmatprep.subr.mxu0 0.0
      %460 = vmatpush1.msra.mxu0 0.0
      %461 = vmatprep.subr.mxu0 0.0
      %462 = vmatpush1.msra.mxu0 0.0
      %463 = vmatprep.subr.mxu0 0.0
      %464 = vmatpush1.msra.mxu0 0.0
      %465 = vmatprep.subr.mxu0 0.0
      %466 = vmatpush1.msra.mxu0 0.0
      %467 = vmatprep.subr.mxu0 0.0
      %468 = vmatpush1.msra.mxu0 0.0
      %469 = vmatprep.subr.mxu0 0.0
      %470 = vmatpush1.msra.mxu0 0.0
      %471 = vmatprep.subr.mxu0 0.0
      %472 = vmatpush1.msra.mxu0 0.0
      %473 = vmatprep.subr.mxu0 0.0
      %474 = vmatpush1.msra.mxu0 0.0
      %475 = vmatprep.subr.mxu0 0.0
      %476 = vmatpush1.msra.mxu0 0.0
      %477 = vmatprep.subr.mxu0 0.0
      %478 = vmatpush1.msra.mxu0 0.0
      %479 = vmatprep.subr.mxu0 0.0
      %480 = vmatpush1.msra.mxu0 0.0
      %481 = vmatprep.subr.mxu0 0.0
      %482 = vmatpush1.msra.mxu0 0.0
      %483 = vmatprep.subr.mxu0 0.0
      %484 = vmatpush1.msra.mxu0 0.0
      %485 = vmatprep.subr.mxu0 0.0
      %486 = vmatpush1.msra.mxu0 0.0
      %487 = vmatprep.subr.mxu0 0.0
      %488 = vmatpush1.msra.mxu0 0.0
      %489 = vmatprep.subr.mxu0 0.0
      %490 = vmatpush1.msra.mxu0 0.0
      %491 = vmatprep.subr.mxu0 0.0
      %492 = vmatpush1.msra.mxu0 0.0
      %493 = vmatprep.subr.mxu0 0.0
      %494 = vmatpush1.msra.mxu0 0.0
      %495 = vmatprep.subr.mxu0 0.0
      %496 = vmatpush1.msra.mxu0 0.0
      %497 = vmatprep.subr.mxu0 0.0
      %498 = vmatpush1.msra.mxu0 0.0
      %499 = vmatprep.mubr.f32.mxu0 0.0
      %500 = vmatmul.mubr.f32.gmra.mrb[0].mxu0 %v433
      %v501 = vpop.f32.mrb[0].mxu0
      %v502 = vadd.f32 0.0, %v501
      %v503 = vpop.f32.mrb[0].mxu0
      %504 = vdwg.mxu0
      %v506 = vsel %vm431, %v414, 0
      %508 = vmatprep.subr.mxu0 0.0
      %509 = vmatpush1.msra.mxu0 %v423
      %510 = vmatprep.subr.mxu0 0.0
      %511 = vmatpush1.msra.mxu0 %v424
      %512 = vmatprep.subr.mxu0 0.0
      %513 = vmatpush1.msra.mxu0 %v425
      %514 = vmatprep.subr.mxu0 0.0
      %515 = vmatpush1.msra.mxu0 %v426
      %516 = vmatprep.subr.mxu0 0.0
      %517 = vmatpush1.msra.mxu0 0.0
      %518 = vmatprep.subr.mxu0 0.0
      %519 = vmatpush1.msra.mxu0 0.0
      %520 = vmatprep.subr.mxu0 0.0
      %521 = vmatpush1.msra.mxu0 0.0
      %522 = vmatprep.subr.mxu0 0.0
      %523 = vmatpush1.msra.mxu0 0.0
      %524 = vmatprep.subr.mxu0 0.0
      %525 = vmatpush1.msra.mxu0 0.0
      %526 = vmatprep.subr.mxu0 0.0
      %527 = vmatpush1.msra.mxu0 0.0
      %528 = vmatprep.subr.mxu0 0.0
      %529 = vmatpush1.msra.mxu0 0.0
      %530 = vmatprep.subr.mxu0 0.0
      %531 = vmatpush1.msra.mxu0 0.0
      %532 = vmatprep.subr.mxu0 0.0
      %533 = vmatpush1.msra.mxu0 0.0
      %534 = vmatprep.subr.mxu0 0.0
      %535 = vmatpush1.msra.mxu0 0.0
      %536 = vmatprep.subr.mxu0 0.0
      %537 = vmatpush1.msra.mxu0 0.0
      %538 = vmatprep.subr.mxu0 0.0
      %539 = vmatpush1.msra.mxu0 0.0
      %540 = vmatprep.subr.mxu0 0.0
      %541 = vmatpush1.msra.mxu0 0.0
      %542 = vmatprep.subr.mxu0 0.0
      %543 = vmatpush1.msra.mxu0 0.0
      %544 = vmatprep.subr.mxu0 0.0
      %545 = vmatpush1.msra.mxu0 0.0
      %546 = vmatprep.subr.mxu0 0.0
      %547 = vmatpush1.msra.mxu0 0.0
      %548 = vmatprep.subr.mxu0 0.0
      %549 = vmatpush1.msra.mxu0 0.0
      %550 = vmatprep.subr.mxu0 0.0
      %551 = vmatpush1.msra.mxu0 0.0
      %552 = vmatprep.subr.mxu0 0.0
      %553 = vmatpush1.msra.mxu0 0.0
      %554 = vmatprep.subr.mxu0 0.0
      %555 = vmatpush1.msra.mxu0 0.0
      %556 = vmatprep.subr.mxu0 0.0
      %557 = vmatpush1.msra.mxu0 0.0
      %558 = vmatprep.subr.mxu0 0.0
      %559 = vmatpush1.msra.mxu0 0.0
      %560 = vmatprep.subr.mxu0 0.0
      %561 = vmatpush1.msra.mxu0 0.0
      %562 = vmatprep.subr.mxu0 0.0
      %563 = vmatpush1.msra.mxu0 0.0
      %564 = vmatprep.subr.mxu0 0.0
      %565 = vmatpush1.msra.mxu0 0.0
      %566 = vmatprep.subr.mxu0 0.0
      %567 = vmatpush1.msra.mxu0 0.0
      %568 = vmatprep.subr.mxu0 0.0
      %569 = vmatpush1.msra.mxu0 0.0
      %570 = vmatprep.subr.mxu0 0.0
      %571 = vmatpush1.msra.mxu0 0.0
      %572 = vmatprep.mubr.f32.mxu0 0.0
      %573 = vmatmul.mubr.f32.gmra.mrb[0].mxu0 %v506
      %v574 = vpop.f32.mrb[0].mxu0
      %v575 = vadd.f32 %v502, %v574
      %v576 = vpop.f32.mrb[0].mxu0
      %577 = vdwg.mxu0
      %v578 = vld [vmem:[%s4] sm:$0xff]
      %v579 = vld [vmem:[%s4 + $0x8] sm:$0xff]
      %v580 = vld [vmem:[%s4 + $0x10] sm:$0xff]
      %v581 = vld [vmem:[%s4 + $0x18] sm:$0xff]
      %v583 = vsel %vm431, %v422, 0
      %585 = vmatprep.subr.mxu0 0.0
      %586 = vmatpush1.msra.mxu0 %v578
      %587 = vmatprep.subr.mxu0 0.0
      %588 = vmatpush1.msra.mxu0 %v579
      %589 = vmatprep.subr.mxu0 0.0
      %590 = vmatpush1.msra.mxu0 %v580
      %591 = vmatprep.subr.mxu0 0.0
      %592 = vmatpush1.msra.mxu0 %v581
      %593 = vmatprep.subr.mxu0 0.0
      %594 = vmatpush1.msra.mxu0 0.0
      %595 = vmatprep.subr.mxu0 0.0
      %596 = vmatpush1.msra.mxu0 0.0
      %597 = vmatprep.subr.mxu0 0.0
      %598 = vmatpush1.msra.mxu0 0.0
      %599 = vmatprep.subr.mxu0 0.0
      %600 = vmatpush1.msra.mxu0 0.0
      %601 = vmatprep.subr.mxu0 0.0
      %602 = vmatpush1.msra.mxu0 0.0
      %603 = vmatprep.subr.mxu0 0.0
      %604 = vmatpush1.msra.mxu0 0.0
      %605 = vmatprep.subr.mxu0 0.0
      %606 = vmatpush1.msra.mxu0 0.0
      %607 = vmatprep.subr.mxu0 0.0
      %608 = vmatpush1.msra.mxu0 0.0
      %609 = vmatprep.subr.mxu0 0.0
      %610 = vmatpush1.msra.mxu0 0.0
      %611 = vmatprep.subr.mxu0 0.0
      %612 = vmatpush1.msra.mxu0 0.0
      %613 = vmatprep.subr.mxu0 0.0
      %614 = vmatpush1.msra.mxu0 0.0
      %615 = vmatprep.subr.mxu0 0.0
      %616 = vmatpush1.msra.mxu0 0.0
      %617 = vmatprep.subr.mxu0 0.0
      %618 = vmatpush1.msra.mxu0 0.0
      %619 = vmatprep.subr.mxu0 0.0
      %620 = vmatpush1.msra.mxu0 0.0
      %621 = vmatprep.subr.mxu0 0.0
      %622 = vmatpush1.msra.mxu0 0.0
      %623 = vmatprep.subr.mxu0 0.0
      %624 = vmatpush1.msra.mxu0 0.0
      %625 = vmatprep.subr.mxu0 0.0
      %626 = vmatpush1.msra.mxu0 0.0
      %627 = vmatprep.subr.mxu0 0.0
      %628 = vmatpush1.msra.mxu0 0.0
      %629 = vmatprep.subr.mxu0 0.0
      %630 = vmatpush1.msra.mxu0 0.0
      %631 = vmatprep.subr.mxu0 0.0
      %632 = vmatpush1.msra.mxu0 0.0
      %633 = vmatprep.subr.mxu0 0.0
      %634 = vmatpush1.msra.mxu0 0.0
      %635 = vmatprep.subr.mxu0 0.0
      %636 = vmatpush1.msra.mxu0 0.0
      %637 = vmatprep.subr.mxu0 0.0
      %638 = vmatpush1.msra.mxu0 0.0
      %639 = vmatprep.subr.mxu0 0.0
      %640 = vmatpush1.msra.mxu0 0.0
      %641 = vmatprep.subr.mxu0 0.0
      %642 = vmatpush1.msra.mxu0 0.0
      %643 = vmatprep.subr.mxu0 0.0
      %644 = vmatpush1.msra.mxu0 0.0
      %645 = vmatprep.subr.mxu0 0.0
      %646 = vmatpush1.msra.mxu0 0.0
      %647 = vmatprep.subr.mxu0 0.0
      %648 = vmatpush1.msra.mxu0 0.0
      %649 = vmatprep.mubr.f32.mxu0 0.0
      %650 = vmatmul.mubr.f32.gmra.mrb[0].mxu0 %v583
      %v651 = vpop.f32.mrb[0].mxu0
      %v652 = vadd.f32 0.0, %v651
      %v653 = vpop.f32.mrb[0].mxu0
      %654 = vdwg.mxu0
      %v655 = vadd.f32 %v575, %v652
      %v656 = vld [vmem:[%s5] sm:$0x1]
      %v658 = vlaneseq
      %v659 = vshrl.u32 %v658, 7
      %v660 = vsub.s32 0, %v659
      %v661 = vrot.slane %v656, %v660
      %v663 = vadd.f32 %v655, %v661
      %664 = vst [vmem:[%s305] sm:$0xff] %v663
      %p665 = scmp.lt.s32.totalorder %s21, 1
      %s666 = scalar_select %p665, %s21, 1
      %p667 = scmp.lt.s32.totalorder %s22, 0
      %s668 = scalar_select %p667, %s22, 0
      %s669 = sadd.s32 %s668, %s666
      %s670 = smul.addr %s669, 8
      %s671 = scalar_lea.vmem %s6, %s670
      // Predicated region
      $region45: #{graph_reconstructor.1} parent=43 // pred_check
        %p672 = pneg %p187
      $region46: #{graph_reconstructor.1} parent=43 // pred_check_branch
        %674 = sbr.rel (%p672) target = $region48
      $region47: #{graph_reconstructor.1} parent=43 // pred_region
        _
      $region48: #{graph_reconstructor.1} parent=43 // pred_fallthru
        _
    $region44: #{graph_reconstructor.1} parent=5 // pred_fallthru
      _
    %p675 = scmp.le.s32.totalorder 2, %s12
    // Predicated region
    $region49: #{graph_reconstructor.1} parent=5 // pred_check
      %p676 = pneg %p675
    $region50: #{graph_reconstructor.1} parent=5 // pred_check_branch
      %678 = sbr.rel (%p676) target = $region52
    $region51: #{graph_reconstructor.1} parent=5 // pred_region
      %s679 = ssub.s32 %s12, 2
      // Predicated region
      $region53: #{graph_reconstructor.1} parent=51 // pred_check
        %p680 = pneg %p193
      $region54: #{graph_reconstructor.1} parent=51 // pred_check_branch
        %682 = sbr.rel (%p680) target = $region56
      $region55: #{graph_reconstructor.1} parent=51 // pred_region
        %p683 = scmp.lt.s32.totalorder %s23, 1
        %s684 = scalar_select %p683, %s23, 1
        %p685 = scmp.lt.s32.totalorder %s24, 0
        %s686 = scalar_select %p685, %s24, 0
        %s687 = sadd.s32 %s686, %s684
        %s688 = smul.addr %s687, 8
        %s689 = scalar_lea.vmem %s6, %s688
      $region56: #{graph_reconstructor.1} parent=51 // pred_fallthru
        _
    $region52: #{graph_reconstructor.1} parent=5 // pred_fallthru
      _
  $region6: #{graph_reconstructor.1} parent=0 // loop_footer
    %s16 = sadd.s32 1, %s12
  $region7: #{graph_reconstructor.1} parent=0 // loop_footer_branch
    %11 = sbr.rel target = $region3
  $region8: #{graph_reconstructor.1} parent=0 // loop_exit
    _

</llo_original>
